<compile_context>
chip_gen: v7x
topology: tpu7x:2x2x1
jax: 0.10.0
libtpu: 0.0.40
codegen_flags: <defaults>
</compile_context>

<pallas_src>
import jax
import jax.numpy as jnp
from jax import lax
from jax.experimental import pallas as pl
from jax.experimental.pallas import tpu as pltpu


def _round_up(a, b):
    return ((a + b - 1) // b) * b


def _conv_stats_kernel(inv_m, eps):
    """Phase 1: conv matmul per M-tile + global per-channel sum / sum-of-squares.

    On the last grid step, BatchNorm is folded into a per-channel FMA:
        scale = gamma * rsqrt(var + eps);  shift = beta - mean * scale
    """
    def kernel(p_ref, w_ref, gamma_ref, beta_ref, y_ref, stats_ref,
               sum_ref, ssq_ref):
        i = pl.program_id(0)

        @pl.when(i == 0)
        def _init():
            sum_ref[...] = jnp.zeros_like(sum_ref)
            ssq_ref[...] = jnp.zeros_like(ssq_ref)
            stats_ref[...] = jnp.zeros_like(stats_ref)

        # Conv as MXU matmul: bf16 operands, f32 accumulation.
        y = jnp.dot(p_ref[...], w_ref[...], preferred_element_type=jnp.float32)
        y_ref[...] = y

        # One-pass batch statistics; zero-padded rows/channels contribute 0.
        sum_ref[...] += jnp.sum(y, axis=0, keepdims=True)
        ssq_ref[...] += jnp.sum(y * y, axis=0, keepdims=True)

        @pl.when(i == pl.num_programs(0) - 1)
        def _finalize():
            mean = sum_ref[...] * inv_m
            var = ssq_ref[...] * inv_m - mean * mean       # biased var (train mode)
            scale = gamma_ref[...] * lax.rsqrt(var + eps)  # EUP, [1, Coutp] only
            shift = beta_ref[...] - mean * scale
            stats_ref[0:1, :] = scale
            stats_ref[1:2, :] = shift

    return kernel


def _bn_lrelu_kernel(neg_slope):
    """Phase 2: z = y * scale + shift, then LeakyReLU(neg_slope)."""
    def kernel(y_ref, stats_ref, out_ref):
        scale = stats_ref[0:1, :]
        shift = stats_ref[1:2, :]
        z = y_ref[...] * scale + shift
        out_ref[...] = jnp.where(z >= 0, z, neg_slope * z)
    return kernel


def unet_down_forward(x, weight, gamma, beta, *, eps=0.8, neg_slope=0.2):
    """x: [N, Cin, H, W] (NCHW, PyTorch convention), weight: [Cout, Cin, 3, 3].

    Returns NCHW [N, Cout, H//2, W//2] matching UNetDown's train-mode forward.
    """
    N, Cin, H, W = x.shape
    Cout = weight.shape[0]
    Ho = (H + 2 - 3) // 2 + 1
    Wo = (W + 2 - 3) // 2 + 1
    M = N * Ho * Wo
    K = Cin * 9

    # Padded / tiled sizes.
    Coutp = _round_up(Cout, 128)          # lane-dense output + MXU N dimension
    Kp = _round_up(K, 8)                  # sublane-aligned contraction depth
    TM = min(512, _round_up(M, 8))        # M tile (sublane-aligned), VMEM-friendly
    Mp = _round_up(M, TM)

    # --- glue: im2col in bf16 (layout only; ~1.1x the bytes of f32 x) ---
    # TODO(synk): build patches in-kernel from HBM x via manual halo DMA to drop
    # this extra HBM round trip entirely.
    xb = x.astype(jnp.bfloat16)
    xp = jnp.pad(xb, ((0, 0), (0, 0), (1, 1), (1, 1)))
    cols = [xp[:, :, kh:kh + 2 * Ho:2, kw:kw + 2 * Wo:2]
            for kh in range(3) for kw in range(3)]             # 9 x [N, Cin, Ho, Wo]
    patches = jnp.stack(cols, axis=2)                          # [N, Cin, 9, Ho, Wo]
    patches = jnp.transpose(patches, (0, 3, 4, 1, 2)).reshape(M, K)
    patches = jnp.pad(patches, ((0, Mp - M), (0, Kp - K)))     # zero pad is inert

    w2d = weight.reshape(Cout, K).T.astype(jnp.bfloat16)       # [K, Cout]
    w2d = jnp.pad(w2d, ((0, Kp - K), (0, Coutp - Cout)))
    gamma2d = jnp.pad(gamma.astype(jnp.float32).reshape(1, Cout),
                      ((0, 0), (0, Coutp - Cout)))
    beta2d = jnp.pad(beta.astype(jnp.float32).reshape(1, Cout),
                     ((0, 0), (0, Coutp - Cout)))

    grid = (Mp // TM,)

    # Phase 1: conv + global batch statistics.  The M axis carries the stats
    # reduction (resident accumulator) so it must stay "arbitrary" (sequential);
    # on v7x the cross-core combine would be needed to parallelise it.
    y, stats = pl.pallas_call(
        _conv_stats_kernel(1.0 / M, eps),
        grid=grid,
        out_shape=(jax.ShapeDtypeStruct((Mp, Coutp), jnp.float32),
                   jax.ShapeDtypeStruct((8, Coutp), jnp.float32)),
        in_specs=[
            pl.BlockSpec((TM, Kp), lambda i: (i, 0)),       # patches tile (bf16)
            pl.BlockSpec((Kp, Coutp), lambda i: (0, 0)),    # weight (resident)
            pl.BlockSpec((1, Coutp), lambda i: (0, 0)),     # gamma
            pl.BlockSpec((1, Coutp), lambda i: (0, 0)),     # beta
        ],
        out_specs=(
            pl.BlockSpec((TM, Coutp), lambda i: (i, 0)),    # conv output y (f32)
            pl.BlockSpec((8, Coutp), lambda i: (0, 0)),     # [scale; shift] stats
        ),
        scratch_shapes=[pltpu.VMEM((1, Coutp), jnp.float32),   # per-channel sum
                        pltpu.VMEM((1, Coutp), jnp.float32)],  # per-channel sumsq
        compiler_params=pltpu.CompilerParams(
            dimension_semantics=("arbitrary",)),
    )(patches, w2d, gamma2d, beta2d)

    # Phase 2: BN apply (single FMA) + LeakyReLU, independent per M tile.
    out = pl.pallas_call(
        _bn_lrelu_kernel(neg_slope),
        grid=grid,
        out_shape=jax.ShapeDtypeStruct((Mp, Coutp), jnp.float32),
        in_specs=[
            pl.BlockSpec((TM, Coutp), lambda i: (i, 0)),
            pl.BlockSpec((8, Coutp), lambda i: (0, 0)),
        ],
        out_specs=pl.BlockSpec((TM, Coutp), lambda i: (i, 0)),
        compiler_params=pltpu.CompilerParams(
            dimension_semantics=("parallel",)),
    )(y, stats)

    # --- glue: [M, Cout] (NHWC-flat, lane-dense) back to NCHW for the caller ---
    out = out[:M, :Cout].reshape(N, Ho, Wo, Cout)
    return jnp.transpose(out, (0, 3, 1, 2))


def _reference(x, weight, gamma, beta, eps=0.8, neg_slope=0.2):
    """Pure-JAX reference (matches PyTorch train-mode forward, f32 conv)."""
    y = lax.conv_general_dilated(
        x, weight, window_strides=(2, 2), padding=((1, 1), (1, 1)),
        dimension_numbers=("NCHW", "OIHW", "NCHW"))
    mean = jnp.mean(y, axis=(0, 2, 3), keepdims=True)
    var = jnp.mean((y - mean) ** 2, axis=(0, 2, 3), keepdims=True)
    z = gamma.reshape(1, -1, 1, 1) * (y - mean) * lax.rsqrt(var + eps) \
        + beta.reshape(1, -1, 1, 1)
    return jnp.where(z >= 0, z, neg_slope * z)


if __name__ == "__main__":
    key = jax.random.PRNGKey(0)
    k_x, k_w, k_g, k_b = jax.random.split(key, 4)

    N, Cin, H, W = 2, 4, 16, 16
    Cout = 8

    x = jax.random.normal(k_x, (N, Cin, H, W), dtype=jnp.float32)
    weight = jax.random.normal(k_w, (Cout, Cin, 3, 3), dtype=jnp.float32) * 0.1
    gamma = jax.random.normal(k_g, (Cout,), dtype=jnp.float32) * 0.1 + 1.0
    beta = jax.random.normal(k_b, (Cout,), dtype=jnp.float32) * 0.1

    out = unet_down_forward(x, weight, gamma, beta)
    out = jax.block_until_ready(out)

    ref = _reference(x, weight, gamma, beta)
    assert out.shape == (N, Cout, H // 2, W // 2), out.shape
    # Tolerance accounts for bf16 MXU operands (f32 accumulation / f32 BN math).
    assert jnp.allclose(out, ref, atol=1e-2, rtol=1e-2), "mismatch vs reference"

    print("KERNEL_OK")
</pallas_src>

<mosaic_0001>
module attributes {stable_mosaic.version = 11 : i64} {
  func.func @kernel(%arg0: i32, %arg1: memref<128x40xbf16, #tpu.memory_space<vmem>>, %arg2: memref<40x128xbf16, #tpu.memory_space<vmem>>, %arg3: memref<1x128xf32, #tpu.memory_space<vmem>>, %arg4: memref<1x128xf32, #tpu.memory_space<vmem>>, %arg5: memref<128x128xf32, #tpu.memory_space<vmem>>, %arg6: memref<8x128xf32, #tpu.memory_space<vmem>>, %arg7: memref<1x128xf32, #tpu.memory_space<vmem>>, %arg8: memref<1x128xf32, #tpu.memory_space<vmem>>) attributes {dimension_semantics = [#tpu.dimension_semantics<arbitrary>], iteration_bounds = array<i64: 1>, scalar_prefetch = 0 : i64, scratch_operands = 2 : i64, tpu.core_type = #tpu.core_type<tc>, window_params = [{transform_indices = @transform_0, window_bounds = array<i64: 128, 40>}, {pipeline_mode = #tpu.pipeline_mode<synchronous>, transform_indices = @transform_1, window_bounds = array<i64: 40, 128>}, {pipeline_mode = #tpu.pipeline_mode<synchronous>, transform_indices = @transform_2, window_bounds = array<i64: 1, 128>}, {pipeline_mode = #tpu.pipeline_mode<synchronous>, transform_indices = @transform_3, window_bounds = array<i64: 1, 128>}, {transform_indices = @transform_4, window_bounds = array<i64: 128, 128>}, {pipeline_mode = #tpu.pipeline_mode<synchronous>, transform_indices = @transform_5, window_bounds = array<i64: 8, 128>}]} {
    %c0_i32 = arith.constant 0 : i32
    %0 = arith.cmpi eq, %arg0, %c0_i32 : i32
    %1 = arith.extui %0 : i1 to i32
    %c0_i32_0 = arith.constant 0 : i32
    %2 = arith.cmpi ne, %1, %c0_i32_0 : i32
    scf.if %2 {
      %cst_18 = arith.constant 0.000000e+00 : f32
      %21 = vector.broadcast %cst_18 : f32 to vector<1x128xf32>
      %c0_19 = arith.constant 0 : index
      %c0_20 = arith.constant 0 : index
      %22 = vector.load %arg7[%c0_19, %c0_20] : memref<1x128xf32, #tpu.memory_space<vmem>>, vector<1x128xf32>
      tpu.vector_store %arg7[%c0_19, %c0_20], %21 {strides = array<i32>} : memref<1x128xf32, #tpu.memory_space<vmem>>, vector<1x128xf32>,
      %cst_21 = arith.constant 0.000000e+00 : f32
      %23 = vector.broadcast %cst_21 : f32 to vector<1x128xf32>
      %c0_22 = arith.constant 0 : index
      %c0_23 = arith.constant 0 : index
      %24 = vector.load %arg8[%c0_22, %c0_23] : memref<1x128xf32, #tpu.memory_space<vmem>>, vector<1x128xf32>
      tpu.vector_store %arg8[%c0_22, %c0_23], %23 {strides = array<i32>} : memref<1x128xf32, #tpu.memory_space<vmem>>, vector<1x128xf32>,
      %cst_24 = arith.constant 0.000000e+00 : f32
      %25 = vector.broadcast %cst_24 : f32 to vector<8x128xf32>
      %c0_25 = arith.constant 0 : index
      %c0_26 = arith.constant 0 : index
      %26 = vector.load %arg6[%c0_25, %c0_26] : memref<8x128xf32, #tpu.memory_space<vmem>>, vector<8x128xf32>
      tpu.vector_store %arg6[%c0_25, %c0_26], %25 {strides = array<i32>} : memref<8x128xf32, #tpu.memory_space<vmem>>, vector<8x128xf32>,
    } else {
    }
    %c0 = arith.constant 0 : index
    %c0_1 = arith.constant 0 : index
    %3 = vector.load %arg1[%c0, %c0_1] : memref<128x40xbf16, #tpu.memory_space<vmem>>, vector<128x40xbf16>
    %c0_2 = arith.constant 0 : index
    %c0_3 = arith.constant 0 : index
    %4 = vector.load %arg2[%c0_2, %c0_3] : memref<40x128xbf16, #tpu.memory_space<vmem>>, vector<40x128xbf16>
    %cst = arith.constant dense<0.000000e+00> : vector<128x128xf32>
    %5 = tpu.matmul %3, %4, %cst {dimension_numbers = #tpu.dot_dimension_numbers<[1], [0], [0], [1], [0, 0, 1, 1], [], []>} : vector<128x40xbf16>, vector<40x128xbf16>, vector<128x128xf32> -> vector<128x128xf32>
    %c0_4 = arith.constant 0 : index
    %c0_5 = arith.constant 0 : index
    %6 = vector.load %arg5[%c0_4, %c0_5] : memref<128x128xf32, #tpu.memory_space<vmem>>, vector<128x128xf32>
    tpu.vector_store %arg5[%c0_4, %c0_5], %5 {strides = array<i32>} : memref<128x128xf32, #tpu.memory_space<vmem>>, vector<128x128xf32>,
    %c0_6 = arith.constant 0 : index
    %c0_7 = arith.constant 0 : index
    %7 = vector.load %arg7[%c0_6, %c0_7] : memref<1x128xf32, #tpu.memory_space<vmem>>, vector<1x128xf32>
    %cst_8 = arith.constant dense<0.000000e+00> : vector<128xf32>
    %8 = vector.multi_reduction <add>, %5, %cst_8 [0] : vector<128x128xf32> to vector<128xf32>
    %9 = vector.shape_cast %8 : vector<128xf32> to vector<1x128xf32>
    %10 = arith.addf %7, %9 : vector<1x128xf32>
    %c0_9 = arith.constant 0 : index
    %c0_10 = arith.constant 0 : index
    %11 = vector.load %arg7[%c0_9, %c0_10] : memref<1x128xf32, #tpu.memory_space<vmem>>, vector<1x128xf32>
    tpu.vector_store %arg7[%c0_9, %c0_10], %10 {strides = array<i32>} : memref<1x128xf32, #tpu.memory_space<vmem>>, vector<1x128xf32>,
    %c0_11 = arith.constant 0 : index
    %c0_12 = arith.constant 0 : index
    %12 = vector.load %arg8[%c0_11, %c0_12] : memref<1x128xf32, #tpu.memory_space<vmem>>, vector<1x128xf32>
    %13 = arith.mulf %5, %5 : vector<128x128xf32>
    %cst_13 = arith.constant dense<0.000000e+00> : vector<128xf32>
    %14 = vector.multi_reduction <add>, %13, %cst_13 [0] : vector<128x128xf32> to vector<128xf32>
    %15 = vector.shape_cast %14 : vector<128xf32> to vector<1x128xf32>
    %16 = arith.addf %12, %15 : vector<1x128xf32>
    %c0_14 = arith.constant 0 : index
    %c0_15 = arith.constant 0 : index
    %17 = vector.load %arg8[%c0_14, %c0_15] : memref<1x128xf32, #tpu.memory_space<vmem>>, vector<1x128xf32>
    tpu.vector_store %arg8[%c0_14, %c0_15], %16 {strides = array<i32>} : memref<1x128xf32, #tpu.memory_space<vmem>>, vector<1x128xf32>,
    %c0_i32_16 = arith.constant 0 : i32
    %18 = arith.cmpi eq, %arg0, %c0_i32_16 : i32
    %19 = arith.extui %18 : i1 to i32
    %c0_i32_17 = arith.constant 0 : i32
    %20 = arith.cmpi ne, %19, %c0_i32_17 : i32
    scf.if %20 {
      %c0_18 = arith.constant 0 : index
      %c0_19 = arith.constant 0 : index
      %21 = vector.load %arg7[%c0_18, %c0_19] : memref<1x128xf32, #tpu.memory_space<vmem>>, vector<1x128xf32>
      %cst_20 = arith.constant 7.812500e-03 : f32
      %22 = vector.broadcast %cst_20 : f32 to vector<1x128xf32>
      %23 = arith.mulf %21, %22 : vector<1x128xf32>
      %c0_21 = arith.constant 0 : index
      %c0_22 = arith.constant 0 : index
      %24 = vector.load %arg8[%c0_21, %c0_22] : memref<1x128xf32, #tpu.memory_space<vmem>>, vector<1x128xf32>
      %cst_23 = arith.constant 7.812500e-03 : f32
      %25 = vector.broadcast %cst_23 : f32 to vector<1x128xf32>
      %26 = arith.mulf %24, %25 : vector<1x128xf32>
      %27 = arith.mulf %23, %23 : vector<1x128xf32>
      %28 = arith.subf %26, %27 : vector<1x128xf32>
      %c0_24 = arith.constant 0 : index
      %c0_25 = arith.constant 0 : index
      %29 = vector.load %arg3[%c0_24, %c0_25] : memref<1x128xf32, #tpu.memory_space<vmem>>, vector<1x128xf32>
      %cst_26 = arith.constant 8.000000e-01 : f32
      %30 = vector.broadcast %cst_26 : f32 to vector<1x128xf32>
      %31 = arith.addf %28, %30 : vector<1x128xf32>
      %32 = math.rsqrt %31 : vector<1x128xf32>
      %33 = arith.mulf %29, %32 : vector<1x128xf32>
      %c0_27 = arith.constant 0 : index
      %c0_28 = arith.constant 0 : index
      %34 = vector.load %arg4[%c0_27, %c0_28] : memref<1x128xf32, #tpu.memory_space<vmem>>, vector<1x128xf32>
      %35 = arith.mulf %23, %33 : vector<1x128xf32>
      %36 = arith.subf %34, %35 : vector<1x128xf32>
      %c0_29 = arith.constant 0 : index
      %c0_30 = arith.constant 0 : index
      %37 = vector.load %arg6[%c0_29, %c0_30] : memref<8x128xf32, #tpu.memory_space<vmem>>, vector<1x128xf32>
      tpu.vector_store %arg6[%c0_29, %c0_30], %33 {strides = array<i32>} : memref<8x128xf32, #tpu.memory_space<vmem>>, vector<1x128xf32>,
      %c1 = arith.constant 1 : index
      %c0_31 = arith.constant 0 : index
      %38 = vector.load %arg6[%c1, %c0_31] : memref<8x128xf32, #tpu.memory_space<vmem>>, vector<1x128xf32>
      tpu.vector_store %arg6[%c1, %c0_31], %36 {strides = array<i32>} : memref<8x128xf32, #tpu.memory_space<vmem>>, vector<1x128xf32>,
    } else {
    }
    return
  }
  func.func @transform_0(%arg0: i32) -> (i32, i32) {
    %c0_i32 = arith.constant 0 : i32
    %c0_i32_0 = arith.constant 0 : i32
    return %arg0, %c0_i32 : i32, i32
  }
  func.func @transform_1(%arg0: i32) -> (i32, i32) {
    %c0_i32 = arith.constant 0 : i32
    %c0_i32_0 = arith.constant 0 : i32
    %c0_i32_1 = arith.constant 0 : i32
    return %c0_i32, %c0_i32_0 : i32, i32
  }
  func.func @transform_2(%arg0: i32) -> (i32, i32) {
    %c0_i32 = arith.constant 0 : i32
    %c0_i32_0 = arith.constant 0 : i32
    %c0_i32_1 = arith.constant 0 : i32
    return %c0_i32, %c0_i32_0 : i32, i32
  }
  func.func @transform_3(%arg0: i32) -> (i32, i32) {
    %c0_i32 = arith.constant 0 : i32
    %c0_i32_0 = arith.constant 0 : i32
    %c0_i32_1 = arith.constant 0 : i32
    return %c0_i32, %c0_i32_0 : i32, i32
  }
  func.func @transform_4(%arg0: i32) -> (i32, i32) {
    %c0_i32 = arith.constant 0 : i32
    %c0_i32_0 = arith.constant 0 : i32
    return %arg0, %c0_i32 : i32, i32
  }
  func.func @transform_5(%arg0: i32) -> (i32, i32) {
    %c0_i32 = arith.constant 0 : i32
    %c0_i32_0 = arith.constant 0 : i32
    %c0_i32_1 = arith.constant 0 : i32
    return %c0_i32, %c0_i32_0 : i32, i32
  }
}

</mosaic_0001>

<llo_original>
// kernel: tpu_custom_call.1
$region0: #{tpu_custom_call.1}
  #allocation0 [shape = 'u32[]', space=smem, size = 0x4, offset = 0x4, fixed_abs, tag = 'smem constant byte address 0x4 - core index']
  #allocation1 [shape = 'u32[144,128]{1,0:T(1,128)}', space=vmem, size = 0x12000, scoped, tag = 'internal scratch']
  #allocation2 [shape = 'f32[1,128]{1,0:T(1,128)}', space=vmem, size = 0x200, scoped, tag = 'scratch operand']
  #allocation3 [shape = 'f32[1,128]{1,0:T(1,128)}', space=vmem, size = 0x200, scoped, tag = 'scratch operand']
  %s0 = inlined_call_operand.vmem [shape: bf16[128,40], index: 0, kind: input, shape index: {}]
  %s1 = inlined_call_operand.vmem [shape: bf16[40,128], index: 1, kind: input, shape index: {}]
  %s2 = inlined_call_operand.vmem [shape: f32[1,128], index: 2, kind: input, shape index: {}]
  %s3 = inlined_call_operand.vmem [shape: f32[1,128], index: 3, kind: input, shape index: {}]
  %s4 = inlined_call_operand.hbm [shape: f32[128,128], index: 4, kind: output, shape index: {0}]
  %s5 = inlined_call_operand.hbm [shape: f32[8,128], index: 5, kind: output, shape index: {1}]
  %6 = xla_tuple %s4, %s5
  %s7 = sld [smem:[#allocation0]]
  $region42: #{tpu_custom_call.1} parent=0
    _
  %s9 = ssub.s32 1, %s7
  %s10 = scalar_select 0, %s9, %s7
  $region1: #{tpu_custom_call.1} parent=0
    #allocation4 [shape = 'u8[65536]{0}', space=vmem, size = 0x10000, scoped, tag = 'output window, operand 0, single buffered']
    #allocation5 [shape = 's32[1]{0}', space=sflag, size = 0x4, scoped, tag = 'scoped memory for tpu_custom_call.1']
    #allocation6 [shape = 'u8[4096]{0}', space=vmem, size = 0x1000, scoped, tag = 'output window, operand 1, single buffered']
    #allocation7 [shape = 's32[1]{0}', space=sflag, size = 0x4, scoped, tag = 'scoped memory for tpu_custom_call.1']
    %11 = vsyncpa [#allocation5], 0
    %12 = vsyncpa [#allocation7], 0
    // Predicated region
    $region2: #{tpu_custom_call.1} parent=1 // pred_check
      _
    $region3: #{tpu_custom_call.1} parent=1 // pred_check_branch
      %14 = sbr.rel (0) target = $region5
    $region4: #{tpu_custom_call.1} parent=1 // pred_region
      _
    $region5: #{tpu_custom_call.1} parent=1 // pred_fallthru
      _
    // Predicated region
    $region6: #{tpu_custom_call.1} parent=1 // pred_check
      _
    $region7: #{tpu_custom_call.1} parent=1 // pred_check_branch
      %16 = sbr.rel (0) target = $region9
    $region8: #{tpu_custom_call.1} parent=1 // pred_region
      _
    $region9: #{tpu_custom_call.1} parent=1 // pred_fallthru
      _
    // Predicated region
    $region10: #{tpu_custom_call.1} parent=1 // pred_check
      _
    $region11: #{tpu_custom_call.1} parent=1 // pred_check_branch
      %18 = sbr.rel (0) target = $region13
    $region12: #{tpu_custom_call.1} parent=1 // pred_region
      _
    $region13: #{tpu_custom_call.1} parent=1 // pred_fallthru
      _
    // Predicated region
    $region14: #{tpu_custom_call.1} parent=1 // pred_check
      _
    $region15: #{tpu_custom_call.1} parent=1 // pred_check_branch
      %20 = sbr.rel (0) target = $region17
    $region16: #{tpu_custom_call.1} parent=1 // pred_region
      _
    $region17: #{tpu_custom_call.1} parent=1 // pred_fallthru
      _
    %p22 = scmp.eq.s32.totalorder 0, 0
    // Predicated region
    $region18: #{tpu_custom_call.1} parent=1 // pred_check
      %p23 = pneg %p22
    $region19: #{tpu_custom_call.1} parent=1 // pred_check_branch
      %25 = sbr.rel (%p23) target = $region21
    $region20: #{tpu_custom_call.1} parent=1 // pred_region
      %26 = vst [vmem:[#allocation2] sm:$0x1] 0.0
      %27 = vst [vmem:[#allocation3] sm:$0x1] 0.0
      %28 = vst [vmem:[#allocation6] sm:$0xff] 0.0
    $region21: #{tpu_custom_call.1} parent=1 // pred_fallthru
      _
    %v29 = vld [vmem:[%s0] sm:$0xf]
    %v30 = vld [vmem:[%s0 + $0x4] sm:$0xf]
    %v31 = vld [vmem:[%s0 + $0x8] sm:$0xf]
    %v32 = vld [vmem:[%s0 + $0xc] sm:$0xf]
    %v33 = vld [vmem:[%s0 + $0x10] sm:$0xf]
    %v34 = vld [vmem:[%s0 + $0x14] sm:$0xf]
    %v35 = vld [vmem:[%s0 + $0x18] sm:$0xf]
    %v36 = vld [vmem:[%s0 + $0x1c] sm:$0xf]
    %v37 = vld [vmem:[%s0 + $0x20] sm:$0xf]
    %v38 = vld [vmem:[%s0 + $0x24] sm:$0xf]
    %v39 = vld [vmem:[%s0 + $0x28] sm:$0xf]
    %v40 = vld [vmem:[%s0 + $0x2c] sm:$0xf]
    %v41 = vld [vmem:[%s0 + $0x30] sm:$0xf]
    %v42 = vld [vmem:[%s0 + $0x34] sm:$0xf]
    %v43 = vld [vmem:[%s0 + $0x38] sm:$0xf]
    %v44 = vld [vmem:[%s0 + $0x3c] sm:$0xf]
    %v45 = vld [vmem:[%s1] sm:$0xf]
    %v46 = vld [vmem:[%s1 + $0x4] sm:$0xf]
    %v47 = vld [vmem:[%s1 + $0x8] sm:$0xf]
    %v48 = vld [vmem:[%s1 + $0xc] sm:$0xf]
    %v49 = vld [vmem:[%s1 + $0x10] sm:$0xf]
    %v66 = vunpack.c.l.b16 %v29
    %v67 = vunpack.c.l.b16 %v30
    %v68 = vunpack.c.l.b16 %v31
    %v69 = vunpack.c.l.b16 %v32
    %v70 = vunpack.c.l.b16 %v33
    %v71 = vunpack.c.l.b16 %v34
    %v72 = vunpack.c.l.b16 %v35
    %v73 = vunpack.c.l.b16 %v36
    %v74 = vunpack.c.l.b16 %v37
    %v75 = vunpack.c.l.b16 %v38
    %v76 = vunpack.c.l.b16 %v39
    %v77 = vunpack.c.l.b16 %v40
    %v78 = vunpack.c.l.b16 %v41
    %v79 = vunpack.c.l.b16 %v42
    %v80 = vunpack.c.l.b16 %v43
    %v81 = vunpack.c.l.b16 %v44
    %v82 = vpack.c.b16 %v67, %v66
    %v83 = vpack.c.b16 %v69, %v68
    %v84 = vpack.c.b16 %v71, %v70
    %v85 = vpack.c.b16 %v73, %v72
    %v86 = vpack.c.b16 %v75, %v74
    %v87 = vpack.c.b16 %v77, %v76
    %v88 = vpack.c.b16 %v79, %v78
    %v89 = vpack.c.b16 %v81, %v80
    %v95 = vunpack.c.l.b16 %v45
    %v96 = vunpack.c.l.b16 %v46
    %v97 = vunpack.c.l.b16 %v47
    %v98 = vunpack.c.l.b16 %v48
    %v99 = vunpack.c.l.b16 %v49
    %v100 = vpack.c.b16 %v96, %v95
    %v101 = vpack.c.b16 %v98, %v97
    %v102 = vpack.c.b16 %v99, %v99
    %vm105 = vcmask 326656
    %v107 = vsel %vm105, %v82, 0
    %v110 = vsel %vm105, %v83, 0
    %v113 = vsel %vm105, %v84, 0
    %v116 = vsel %vm105, %v85, 0
    %v119 = vsel %vm105, %v86, 0
    %v122 = vsel %vm105, %v87, 0
    %v125 = vsel %vm105, %v88, 0
    %v128 = vsel %vm105, %v89, 0
    %vm130 = vcmask 1043456
    %v132 = vsel %vm130, %v102, 0
    %134 = vmatprep.subr.bf16.mxu0 0
    %135 = vmatpush1.bf16.msra.mxu0 %v100
    %136 = vmatprep.subr.bf16.mxu0 0
    %137 = vmatpush1.bf16.msra.mxu0 %v101
    %138 = vmatprep.subr.bf16.mxu0 0
    %139 = vmatpush1.bf16.msra.mxu0 %v132
    %140 = vmatprep.subr.bf16.mxu0 0
    %141 = vmatpush1.bf16.msra.mxu0 0
    %142 = vmatprep.subr.bf16.mxu0 0
    %143 = vmatpush1.bf16.msra.mxu0 0
    %144 = vmatprep.subr.bf16.mxu0 0
    %145 = vmatpush1.bf16.msra.mxu0 0
    %146 = vmatprep.subr.bf16.mxu0 0
    %147 = vmatpush1.bf16.msra.mxu0 0
    %148 = vmatprep.subr.bf16.mxu0 0
    %149 = vmatpush1.bf16.msra.mxu0 0
    %150 = vmatprep.subr.bf16.mxu0 0
    %151 = vmatpush1.bf16.msra.mxu0 0
    %152 = vmatprep.subr.bf16.mxu0 0
    %153 = vmatpush1.bf16.msra.mxu0 0
    %154 = vmatprep.subr.bf16.mxu0 0
    %155 = vmatpush1.bf16.msra.mxu0 0
    %156 = vmatprep.subr.bf16.mxu0 0
    %157 = vmatpush1.bf16.msra.mxu0 0
    %158 = vmatprep.subr.bf16.mxu0 0
    %159 = vmatpush1.bf16.msra.mxu0 0
    %160 = vmatprep.subr.bf16.mxu0 0
    %161 = vmatpush1.bf16.msra.mxu0 0
    %162 = vmatprep.subr.bf16.mxu0 0
    %163 = vmatpush1.bf16.msra.mxu0 0
    %164 = vmatprep.subr.bf16.mxu0 0
    %165 = vmatpush1.bf16.msra.mxu0 0
    %166 = vmatprep.mubr.bf16.mxu0 0
    %167 = vmatmul.mubr.bf16.gmra.mrb[0].mxu0 %v107
    %v168 = vpop.f32.mrb[0].mxu0
    %v169 = vadd.f32 0.0, %v168
    %v170 = vpop.f32.mrb[0].mxu0
    %v171 = vpop.f32.mrb[0].mxu0
    %v172 = vadd.f32 0.0, %v171
    %v173 = vpop.f32.mrb[0].mxu0
    %174 = vmatprep.mubr.bf16.mxu0 0
    %175 = vmatmul.mubr.bf16.gmra.mrb[0].mxu0 %v110
    %v176 = vpop.f32.mrb[0].mxu0
    %v177 = vadd.f32 0.0, %v176
    %v178 = vpop.f32.mrb[0].mxu0
    %v179 = vpop.f32.mrb[0].mxu0
    %v180 = vadd.f32 0.0, %v179
    %v181 = vpop.f32.mrb[0].mxu0
    %182 = vmatprep.mubr.bf16.mxu0 0
    %183 = vmatmul.mubr.bf16.gmra.mrb[0].mxu0 %v113
    %v184 = vpop.f32.mrb[0].mxu0
    %v185 = vadd.f32 0.0, %v184
    %v186 = vpop.f32.mrb[0].mxu0
    %v187 = vpop.f32.mrb[0].mxu0
    %v188 = vadd.f32 0.0, %v187
    %v189 = vpop.f32.mrb[0].mxu0
    %190 = vmatprep.mubr.bf16.mxu0 0
    %191 = vmatmul.mubr.bf16.gmra.mrb[0].mxu0 %v116
    %v192 = vpop.f32.mrb[0].mxu0
    %v193 = vadd.f32 0.0, %v192
    %v194 = vpop.f32.mrb[0].mxu0
    %v195 = vpop.f32.mrb[0].mxu0
    %v196 = vadd.f32 0.0, %v195
    %v197 = vpop.f32.mrb[0].mxu0
    %198 = vmatprep.mubr.bf16.mxu0 0
    %199 = vmatmul.mubr.bf16.gmra.mrb[0].mxu0 %v119
    %v200 = vpop.f32.mrb[0].mxu0
    %v201 = vadd.f32 0.0, %v200
    %v202 = vpop.f32.mrb[0].mxu0
    %v203 = vpop.f32.mrb[0].mxu0
    %v204 = vadd.f32 0.0, %v203
    %v205 = vpop.f32.mrb[0].mxu0
    %206 = vmatprep.mubr.bf16.mxu0 0
    %207 = vmatmul.mubr.bf16.gmra.mrb[0].mxu0 %v122
    %v208 = vpop.f32.mrb[0].mxu0
    %v209 = vadd.f32 0.0, %v208
    %v210 = vpop.f32.mrb[0].mxu0
    %v211 = vpop.f32.mrb[0].mxu0
    %v212 = vadd.f32 0.0, %v211
    %v213 = vpop.f32.mrb[0].mxu0
    %214 = vmatprep.mubr.bf16.mxu0 0
    %215 = vmatmul.mubr.bf16.gmra.mrb[0].mxu0 %v125
    %v216 = vpop.f32.mrb[0].mxu0
    %v217 = vadd.f32 0.0, %v216
    %v218 = vpop.f32.mrb[0].mxu0
    %v219 = vpop.f32.mrb[0].mxu0
    %v220 = vadd.f32 0.0, %v219
    %v221 = vpop.f32.mrb[0].mxu0
    %222 = vmatprep.mubr.bf16.mxu0 0
    %223 = vmatmul.mubr.bf16.gmra.mrb[0].mxu0 %v128
    %v224 = vpop.f32.mrb[0].mxu0
    %v225 = vadd.f32 0.0, %v224
    %v226 = vpop.f32.mrb[0].mxu0
    %v227 = vpop.f32.mrb[0].mxu0
    %v228 = vadd.f32 0.0, %v227
    %v229 = vpop.f32.mrb[0].mxu0
    %230 = vdwg.mxu0
    %231 = vst [vmem:[#allocation4] sm:$0xff] %v169
    %232 = vst [vmem:[#allocation4 + $0x8] sm:$0xff] %v172
    %233 = vst [vmem:[#allocation4 + $0x10] sm:$0xff] %v177
    %234 = vst [vmem:[#allocation4 + $0x18] sm:$0xff] %v180
    %235 = vst [vmem:[#allocation4 + $0x20] sm:$0xff] %v185
    %236 = vst [vmem:[#allocation4 + $0x28] sm:$0xff] %v188
    %237 = vst [vmem:[#allocation4 + $0x30] sm:$0xff] %v193
    %238 = vst [vmem:[#allocation4 + $0x38] sm:$0xff] %v196
    %239 = vst [vmem:[#allocation4 + $0x40] sm:$0xff] %v201
    %240 = vst [vmem:[#allocation4 + $0x48] sm:$0xff] %v204
    %241 = vst [vmem:[#allocation4 + $0x50] sm:$0xff] %v209
    %242 = vst [vmem:[#allocation4 + $0x58] sm:$0xff] %v212
    %243 = vst [vmem:[#allocation4 + $0x60] sm:$0xff] %v217
    %244 = vst [vmem:[#allocation4 + $0x68] sm:$0xff] %v220
    %245 = vst [vmem:[#allocation4 + $0x70] sm:$0xff] %v225
    %246 = vst [vmem:[#allocation4 + $0x78] sm:$0xff] %v228
    %v247 = vld [vmem:[#allocation2] sm:$0x1]
    %v248 = vadd.f32 %v169, %v172
    %v249 = vadd.f32 %v248, %v177
    %v250 = vadd.f32 %v249, %v180
    %v251 = vadd.f32 %v250, %v185
    %v252 = vadd.f32 %v251, %v188
    %v253 = vadd.f32 %v252, %v193
    %v254 = vadd.f32 %v253, %v196
    %v255 = vadd.f32 %v254, %v201
    %v256 = vadd.f32 %v255, %v204
    %v257 = vadd.f32 %v256, %v209
    %v258 = vadd.f32 %v257, %v212
    %v259 = vadd.f32 %v258, %v217
    %v260 = vadd.f32 %v259, %v220
    %v261 = vadd.f32 %v260, %v225
    %v262 = vadd.f32 %v261, %v228
    %v263 = vrot.slane %v262, 4
    %v264 = vadd.f32 %v262, %v263
    %v265 = vrot.slane %v264, 2
    %v266 = vadd.f32 %v264, %v265
    %v267 = vrot.slane %v266, 1
    %v268 = vadd.f32 %v266, %v267
    %v269 = vadd.f32 %v247, %v268
    %270 = vst [vmem:[#allocation2] sm:$0x1] %v269
    %v271 = vld [vmem:[#allocation3] sm:$0x1]
    %v272 = vmul.f32 %v169, %v169
    %v273 = vmul.f32 %v172, %v172
    %v274 = vmul.f32 %v177, %v177
    %v275 = vmul.f32 %v180, %v180
    %v276 = vmul.f32 %v185, %v185
    %v277 = vmul.f32 %v188, %v188
    %v278 = vmul.f32 %v193, %v193
    %v279 = vmul.f32 %v196, %v196
    %v280 = vmul.f32 %v201, %v201
    %v281 = vmul.f32 %v204, %v204
    %v282 = vmul.f32 %v209, %v209
    %v283 = vmul.f32 %v212, %v212
    %v284 = vmul.f32 %v217, %v217
    %v285 = vmul.f32 %v220, %v220
    %v286 = vmul.f32 %v225, %v225
    %v287 = vmul.f32 %v228, %v228
    %v288 = vadd.f32 %v272, %v273
    %v289 = vadd.f32 %v288, %v274
    %v290 = vadd.f32 %v289, %v275
    %v291 = vadd.f32 %v290, %v276
    %v292 = vadd.f32 %v291, %v277
    %v293 = vadd.f32 %v292, %v278
    %v294 = vadd.f32 %v293, %v279
    %v295 = vadd.f32 %v294, %v280
    %v296 = vadd.f32 %v295, %v281
    %v297 = vadd.f32 %v296, %v282
    %v298 = vadd.f32 %v297, %v283
    %v299 = vadd.f32 %v298, %v284
    %v300 = vadd.f32 %v299, %v285
    %v301 = vadd.f32 %v300, %v286
    %v302 = vadd.f32 %v301, %v287
    %v303 = vrot.slane %v302, 4
    %v304 = vadd.f32 %v302, %v303
    %v305 = vrot.slane %v304, 2
    %v306 = vadd.f32 %v304, %v305
    %v307 = vrot.slane %v306, 1
    %v308 = vadd.f32 %v306, %v307
    %v309 = vadd.f32 %v271, %v308
    %310 = vst [vmem:[#allocation3] sm:$0x1] %v309
    // Predicated region
    $region22: #{tpu_custom_call.1} parent=1 // pred_check
      %p311 = pneg %p22
    $region23: #{tpu_custom_call.1} parent=1 // pred_check_branch
      %313 = sbr.rel (%p311) target = $region25
    $region24: #{tpu_custom_call.1} parent=1 // pred_region
      %v314 = vld [vmem:[#allocation2] sm:$0x1]
      %v315 = vmul.f32 %v314, 0.0078125
      %v316 = vld [vmem:[#allocation3] sm:$0x1]
      %v317 = vmul.f32 %v316, 0.0078125
      %v318 = vmul.f32 %v315, %v315
      %v319 = vsub.f32 %v317, %v318
      %v320 = vld [vmem:[%s2] sm:$0x1]
      %v321 = vadd.f32 %v319, 0.8
      %v322 = vrsqrt.pop %v321
      %v323 = vmul.f32 %v320, %v322
      %v324 = vld [vmem:[%s3] sm:$0x1]
      %v325 = vmul.f32 %v315, %v323
      %v326 = vsub.f32 %v324, %v325
      %327 = vst [vmem:[#allocation6] sm:$0x1] %v323
      %328 = vst [vmem:[#allocation6 + $0x1] sm:$0x1] %v326
    $region25: #{tpu_custom_call.1} parent=1 // pred_fallthru
      _
    // Predicated region
    $region26: #{tpu_custom_call.1} parent=1 // pred_check
      _
    $region27: #{tpu_custom_call.1} parent=1 // pred_check_branch
      %330 = sbr.rel (0) target = $region29
    $region28: #{tpu_custom_call.1} parent=1 // pred_region
      %s332 = ssub.s32 2048, 2048
      %333 = vsyncadd [#allocation5], %s332
      %s334 = sshll.u32 [#allocation4], 4
      %s335 = int_to_ptr.vmem [resolvable:$true] %s334
      %340 = dma.vmem_to_hbm [thread:$0]  %s335, 2048, %s4, [#allocation5], 128, 128, 8
    $region29: #{tpu_custom_call.1} parent=1 // pred_fallthru
      _
    // Predicated region
    $region30: #{tpu_custom_call.1} parent=1 // pred_check
      _
    $region31: #{tpu_custom_call.1} parent=1 // pred_check_branch
      %342 = sbr.rel (0) target = $region33
    $region32: #{tpu_custom_call.1} parent=1 // pred_region
      %s344 = ssub.s32 128, 128
      %345 = vsyncadd [#allocation7], %s344
      %s347 = sshll.u32 [#allocation6], 4
      %s348 = int_to_ptr.vmem [resolvable:$true] %s347
      %350 = dma.vmem_to_hbm [thread:$0]  %s348, 128, %s5, [#allocation7]
    $region33: #{tpu_custom_call.1} parent=1 // pred_fallthru
      _
    // Predicated region
    $region34: #{tpu_custom_call.1} parent=1 // pred_check
      _
    $region35: #{tpu_custom_call.1} parent=1 // pred_check_branch
      %352 = sbr.rel (0) target = $region37
    $region36: #{tpu_custom_call.1} parent=1 // pred_region
      %353 = dma.done [#allocation5], 2048
    $region37: #{tpu_custom_call.1} parent=1 // pred_fallthru
      _
    // Predicated region
    $region38: #{tpu_custom_call.1} parent=1 // pred_check
      _
    $region39: #{tpu_custom_call.1} parent=1 // pred_check_branch
      %355 = sbr.rel (0) target = $region41
    $region40: #{tpu_custom_call.1} parent=1 // pred_region
      %356 = dma.done [#allocation7], 128
    $region41: #{tpu_custom_call.1} parent=1 // pred_fallthru
      _
    %357 = vsyncpa [#allocation5], 1
    %358 = vsyncpa [#allocation7], 1

</llo_original>
